<compile_context>
chip_gen: v7x
topology: tpu7x:2x2x1
jax: 0.10.0
libtpu: 0.0.40
codegen_flags: <defaults>
</compile_context>

<pallas_src>
import functools

import jax
import jax.numpy as jnp
from jax.experimental import pallas as pl
from jax.experimental.pallas import tpu as pltpu


# ----------------------------------------------------------------------------
# Pallas kernel 1: fused teacher+student dense encoder layer
#   o = gelu_tanh((x * att) @ [W_t | W_s] + [b_t | b_s])
#   x, att, W in bf16 (MXU bf16 path, f32 accumulation), epilogue in f32,
#   output stored in bf16.
# ----------------------------------------------------------------------------
def _encoder_kernel(x_ref, m_ref, w_ref, b_ref, o_ref):
    # Attention-mask multiply fused in-kernel (bf16 * bf16, lane broadcast of
    # the (TM,1) column) -- avoids an extra f32 activation pass through HBM.
    x = x_ref[...] * m_ref[...]
    h = jnp.dot(x, w_ref[...], preferred_element_type=jnp.float32)   # MXU, f32 acc
    h = h + b_ref[...]                                               # f32 bias
    # tanh-approx GELU: the transcendental runs on the EUP slot instead of a
    # long exact-erf f32 polynomial on the VALU (the binding slot on v6e/v7x
    # once the memory side is bf16).  The encoder is synthetic, so the tiny
    # erf-vs-tanh difference is within the already-accepted bf16 tolerance.
    o_ref[...] = jax.nn.gelu(h, approximate=True).astype(o_ref.dtype)  # bf16 store


def _pick_row_tile(M, cap):
    """Row tile: multiple of 16 (bf16 sublane packing), <= cap, and when
    possible >= 2 grid steps so the "parallel" row axis can be sharded across
    both v7x TensorCores."""
    if M <= 16:
        return M                      # single full block (exempt from tiling rules)
    half = -(-M // 2)                 # ceil(M/2)
    half16 = -(-half // 16) * 16      # round up to a multiple of 16
    return max(16, min(cap, half16))


def encode_fused(x, att, w_fused, b_fused, *, tm_cap=512):
    """x: (M, H) bf16, att: (M, 1) bf16, w_fused: (H, 2H) bf16, b_fused: (1, 2H) f32
    -> (M, 2H) bf16 (teacher in cols [:H], student in cols [H:]).

    Teacher and student weights are concatenated along the output dim so the
    activation block is read from HBM once for both encoders and the MXU sees
    a 2H-wide output.  Rows are tiled (grid over M) so Pallas double-buffers
    the activation/output DMA against the MXU work; the constant-index weight
    block is fetched once by the pipeline and its double buffer fits easily in
    the pinned VMEM budget with bf16 weights + bf16 output.
    """
    M, K = x.shape
    _, N2 = w_fused.shape
    TM = _pick_row_tile(M, tm_cap)
    grid = (pl.cdiv(M, TM),)

    flops = 2 * M * N2 * K
    bytes_accessed = (M * K * 2) + (M * 2) + (K * N2 * 2) + (N2 * 4) + (M * N2 * 2)

    return pl.pallas_call(
        _encoder_kernel,
        out_shape=jax.ShapeDtypeStruct((M, N2), jnp.bfloat16),
        grid=grid,
        in_specs=[
            pl.BlockSpec((TM, K), lambda i: (i, 0)),   # activation rows, pipelined
            pl.BlockSpec((TM, 1), lambda i: (i, 0)),   # attention-mask column
            pl.BlockSpec((K, N2), lambda i: (0, 0)),   # fused bf16 weights, resident
            pl.BlockSpec((1, N2), lambda i: (0, 0)),   # fused f32 bias, resident
        ],
        out_specs=pl.BlockSpec((TM, N2), lambda i: (i, 0)),
        compiler_params=pltpu.CompilerParams(
            dimension_semantics=("parallel",),          # megacore on v7x
            vmem_limit_bytes=32 * 1024 * 1024,          # pinned; ~14 MiB worst case
        ),
        cost_estimate=pl.CostEstimate(
            flops=flops, transcendentals=M * N2, bytes_accessed=bytes_accessed),
    )(x, att, w_fused, b_fused)


# ----------------------------------------------------------------------------
# Pallas kernel 2: the two MSE reductions of the TS head.
# Input rows are ordered [even-batch h | even-batch t | odd-batch h |
# odd-batch t], columns [teacher | student], so the original
# gather/concat/reshape/slice reduces to static slices:
#   t_s_loss = mean((teacher - student)^2)            over the first half
#   s_s_loss = mean((student_even - student_odd)^2)   first half vs second half
# Both scalars are written straight to SMEM.
# ----------------------------------------------------------------------------
def _ts_losses_kernel(hid_ref, out_ref):
    hid = hid_ref[...].astype(jnp.float32)     # (2B, 2H), upcast from bf16
    R, C2 = hid.shape
    Bh = R // 2
    H = C2 // 2
    a = hid[:Bh]                               # even-batch entity rows
    b = hid[Bh:]                               # odd-batch entity rows (paired)
    d_ts = a[:, :H] - a[:, H:]                 # teacher vs student (even batches)
    d_ss = a[:, H:] - b[:, H:]                 # student even vs student odd
    inv_n = 1.0 / float(d_ts.size)             # static, folded at trace time
    out_ref[0] = jnp.sum(d_ts * d_ts) * inv_n
    out_ref[1] = jnp.sum(d_ss * d_ss) * inv_n


def ts_losses(fused_hidden):
    R, C2 = fused_hidden.shape
    out = pl.pallas_call(
        _ts_losses_kernel,
        out_shape=jax.ShapeDtypeStruct((2,), jnp.float32),
        grid=(1,),
        in_specs=[pl.BlockSpec((R, C2), lambda i: (0, 0))],
        out_specs=pl.BlockSpec(memory_space=pltpu.MemorySpace.SMEM),
    )(fused_hidden)
    return out[0], out[1]


# ----------------------------------------------------------------------------
# Glue: simplified mask_tokens (MLM masking) in plain JAX.
# ----------------------------------------------------------------------------
def mask_tokens_jax(key, input_ids, not_mask_pos, mask_token_id, vocab_size):
    # TODO(synk): real tokenizer special-token / pad-token masks are omitted
    # (no tokenizer available); the 15% / 80% / 10% Bernoulli logic is kept.
    k1, k2, k3, k4 = jax.random.split(key, 4)
    masked = jax.random.bernoulli(k1, 0.15, input_ids.shape) & (
        ~not_mask_pos.astype(bool))
    labels = jnp.where(masked, input_ids, -100)
    replaced = jax.random.bernoulli(k2, 0.8, input_ids.shape) & masked
    inputs = jnp.where(replaced, mask_token_id, input_ids)
    randomized = jax.random.bernoulli(k3, 0.5, input_ids.shape) & masked & (~replaced)
    random_words = jax.random.randint(k4, input_ids.shape, 0, vocab_size)
    inputs = jnp.where(randomized, random_words, inputs)
    return inputs, labels


# ----------------------------------------------------------------------------
# Shared prep: MLM masking + gather of the 2B entity-marker rows.
# ----------------------------------------------------------------------------
def _prepare_entity_rows(params, input_ids, mask, h_pos, t_pos, h_end, t_end, *,
                         max_length, mask_token_id, vocab_size, mlm_key):
    B = input_ids.size // max_length
    assert B % 2 == 0, "TS entity_marker representation requires an even batch"
    input_ids = input_ids.reshape(-1, max_length)
    mask = mask.reshape(-1, max_length)
    h_pos = h_pos.reshape(-1)
    t_pos = t_pos.reshape(-1)
    h_end = h_end.reshape(-1)
    t_end = t_end.reshape(-1)

    indice = jnp.arange(B)
    not_mask_pos = jnp.zeros((B, max_length), dtype=jnp.int32)
    not_mask_pos = not_mask_pos.at[indice, h_pos].set(1)
    not_mask_pos = not_mask_pos.at[indice, t_pos].set(1)
    not_mask_pos = not_mask_pos.at[indice, h_end].set(1)
    not_mask_pos = not_mask_pos.at[indice, t_end].set(1)

    m_input, _m_labels = mask_tokens_jax(mlm_key, input_ids, not_mask_pos,
                                         mask_token_id, vocab_size)

    # Only the h_pos / t_pos rows feed the returned losses.  Row order
    # [even-batch h | even-batch t | odd-batch h | odd-batch t] turns the
    # original concat/reshape/slice into two contiguous halves downstream.
    batch_even = indice[0::2]
    batch_odd = indice[1::2]
    row_batch = jnp.concatenate([batch_even, batch_even, batch_odd, batch_odd])
    row_pos = jnp.concatenate([h_pos[batch_even], t_pos[batch_even],
                               h_pos[batch_odd], t_pos[batch_odd]])
    tokens = m_input[row_batch, row_pos]                           # (2B,)
    x_rows = params["embedding"][tokens]                           # (2B, H) bf16 gather
    # TODO(synk): multiplying rows by the attention mask is a stand-in for real
    # BERT attention masking; acceptable only because the encoder is synthetic.
    att = mask[row_batch, row_pos].astype(jnp.bfloat16)[:, None]   # (2B, 1) bf16
    return x_rows, att


# ----------------------------------------------------------------------------
# TS forward (entity_marker output representation)
# ----------------------------------------------------------------------------
def ts_forward(params, input_ids, mask, label, h_pos, t_pos, h_end, t_end, *,
               hidden_size, max_length, mask_token_id, vocab_size, mlm_key):
    del label  # kept for signature parity with the PyTorch module; unused
    x_rows, att = _prepare_entity_rows(
        params, input_ids, mask, h_pos, t_pos, h_end, t_end,
        max_length=max_length, mask_token_id=mask_token_id,
        vocab_size=vocab_size, mlm_key=mlm_key)
    fused_hidden = encode_fused(x_rows, att, params["enc_w"], params["enc_b"])
    t_s_loss, s_s_loss = ts_losses(fused_hidden)
    return t_s_loss, s_s_loss


def ts_forward_reference(params, input_ids, mask, label, h_pos, t_pos, h_end,
                         t_end, *, hidden_size, max_length, mask_token_id,
                         vocab_size, mlm_key):
    """Pure-JAX reference (mirrors the kernel arithmetic, incl. bf16 rounding)."""
    del label
    x_rows, att = _prepare_entity_rows(
        params, input_ids, mask, h_pos, t_pos, h_end, t_end,
        max_length=max_length, mask_token_id=mask_token_id,
        vocab_size=vocab_size, mlm_key=mlm_key)
    xm = x_rows * att
    h = jnp.dot(xm, params["enc_w"], preferred_element_type=jnp.float32)
    h = h + params["enc_b"]
    hid = jax.nn.gelu(h, approximate=True).astype(jnp.bfloat16).astype(jnp.float32)
    R = hid.shape[0]
    a, b = hid[: R // 2], hid[R // 2:]
    H = hidden_size
    d_ts = a[:, :H] - a[:, H:]
    d_ss = a[:, H:] - b[:, H:]
    return jnp.mean(d_ts * d_ts), jnp.mean(d_ss * d_ss)


# ----------------------------------------------------------------------------
# Deterministic parameter init + driver
# ----------------------------------------------------------------------------
def init_params(key, vocab_size, hidden_size):
    k_e, k_tw, k_tb, k_sw, k_sb = jax.random.split(key, 5)
    scale = 1.0 / jnp.sqrt(hidden_size)
    teacher_w = jax.random.normal(k_tw, (hidden_size, hidden_size), jnp.float32) * scale
    student_w = jax.random.normal(k_sw, (hidden_size, hidden_size), jnp.float32) * scale
    teacher_b = jax.random.normal(k_tb, (1, hidden_size), jnp.float32) * 0.01
    student_b = jax.random.normal(k_sb, (1, hidden_size), jnp.float32) * 0.01
    return {
        # bf16 embedding table: the gather emits bf16 directly (no cast pass).
        "embedding": (jax.random.normal(k_e, (vocab_size, hidden_size), jnp.float32)
                      * scale).astype(jnp.bfloat16),
        # Fused [teacher | student] weights, pre-concatenated and pre-cast once.
        "enc_w": jnp.concatenate([teacher_w, student_w], axis=1).astype(jnp.bfloat16),
        "enc_b": jnp.concatenate([teacher_b, student_b], axis=1).astype(jnp.float32),
    }


if __name__ == "__main__":
    B, L, H, V = 4, 16, 128, 64      # batch, max_length, hidden_size, vocab
    MASK_ID = V - 1

    key = jax.random.PRNGKey(0)
    k_par, k_inp, k_pos, k_mlm = jax.random.split(key, 4)
    params = init_params(k_par, V, H)

    input_ids = jax.random.randint(k_inp, (B, L), 0, V, dtype=jnp.int32)
    attn_mask = jnp.ones((B, L), dtype=jnp.int32)
    label = jax.random.randint(k_pos, (B,), 0, 10, dtype=jnp.int32)
    kp = jax.random.split(k_pos, 4)
    h_pos = jax.random.randint(kp[0], (B,), 0, L // 2, dtype=jnp.int32)
    h_end = h_pos + 1
    t_pos = jax.random.randint(kp[1], (B,), L // 2, L - 1, dtype=jnp.int32)
    t_end = t_pos + 1

    fwd = jax.jit(functools.partial(
        ts_forward, hidden_size=H, max_length=L, mask_token_id=MASK_ID,
        vocab_size=V))

    t_s_loss, s_s_loss = fwd(params, input_ids, attn_mask, label,
                             h_pos, t_pos, h_end, t_end, mlm_key=k_mlm)
    jax.block_until_ready((t_s_loss, s_s_loss))

    assert t_s_loss.shape == () and s_s_loss.shape == ()
    assert bool(jnp.isfinite(t_s_loss)) and bool(jnp.isfinite(s_s_loss))

    # Correctness check vs the pure-JAX reference (generous tol for bf16 path).
    ref_ts, ref_ss = ts_forward_reference(
        params, input_ids, attn_mask, label, h_pos, t_pos, h_end, t_end,
        hidden_size=H, max_length=L, mask_token_id=MASK_ID, vocab_size=V,
        mlm_key=k_mlm)
    assert abs(float(t_s_loss) - float(ref_ts)) <= 2e-2 * abs(float(ref_ts)) + 1e-4
    assert abs(float(s_s_loss) - float(ref_ss)) <= 2e-2 * abs(float(ref_ss)) + 1e-4

    print("KERNEL_OK")
</pallas_src>

<mosaic_0001>
module attributes {stable_mosaic.version = 11 : i64} {
  func.func @_encoder_kernel(%arg0: i32, %arg1: memref<8x128xbf16, #tpu.memory_space<vmem>>, %arg2: memref<8x1xbf16, #tpu.memory_space<vmem>>, %arg3: memref<128x256xbf16, #tpu.memory_space<vmem>>, %arg4: memref<1x256xf32, #tpu.memory_space<vmem>>, %arg5: memref<8x256xbf16, #tpu.memory_space<vmem>>) attributes {dimension_semantics = [#tpu.dimension_semantics<parallel>], iteration_bounds = array<i64: 1>, scalar_prefetch = 0 : i64, scratch_operands = 0 : i64, tpu.core_type = #tpu.core_type<tc>, window_params = [{transform_indices = @transform_0, window_bounds = array<i64: 8, 128>}, {transform_indices = @transform_1, window_bounds = array<i64: 8, 1>}, {pipeline_mode = #tpu.pipeline_mode<synchronous>, transform_indices = @transform_2, window_bounds = array<i64: 128, 256>}, {pipeline_mode = #tpu.pipeline_mode<synchronous>, transform_indices = @transform_3, window_bounds = array<i64: 1, 256>}, {transform_indices = @transform_4, window_bounds = array<i64: 8, 256>}]} {
    %c0 = arith.constant 0 : index
    %c0_0 = arith.constant 0 : index
    %0 = vector.load %arg1[%c0, %c0_0] : memref<8x128xbf16, #tpu.memory_space<vmem>>, vector<8x128xbf16>
    %c0_1 = arith.constant 0 : index
    %c0_2 = arith.constant 0 : index
    %1 = vector.load %arg2[%c0_1, %c0_2] : memref<8x1xbf16, #tpu.memory_space<vmem>>, vector<8x1xbf16>
    %2 = vector.broadcast %1 : vector<8x1xbf16> to vector<8x128xbf16>
    %3 = arith.mulf %0, %2 : vector<8x128xbf16>
    %c0_3 = arith.constant 0 : index
    %c0_4 = arith.constant 0 : index
    %4 = vector.load %arg3[%c0_3, %c0_4] : memref<128x256xbf16, #tpu.memory_space<vmem>>, vector<128x256xbf16>
    %cst = arith.constant dense<0.000000e+00> : vector<8x256xf32>
    %5 = tpu.matmul %3, %4, %cst {dimension_numbers = #tpu.dot_dimension_numbers<[1], [0], [0], [1], [0, 0, 1, 1], [], []>} : vector<8x128xbf16>, vector<128x256xbf16>, vector<8x256xf32> -> vector<8x256xf32>
    %c0_5 = arith.constant 0 : index
    %c0_6 = arith.constant 0 : index
    %6 = vector.load %arg4[%c0_5, %c0_6] : memref<1x256xf32, #tpu.memory_space<vmem>>, vector<1x256xf32>
    %7 = vector.broadcast %6 : vector<1x256xf32> to vector<8x256xf32>
    %8 = arith.addf %5, %7 : vector<8x256xf32>
    %9 = arith.mulf %8, %8 : vector<8x256xf32>
    %10 = arith.mulf %8, %9 : vector<8x256xf32>
    %cst_7 = arith.constant 4.471500e-02 : f32
    %11 = vector.broadcast %cst_7 : f32 to vector<8x256xf32>
    %12 = arith.mulf %11, %10 : vector<8x256xf32>
    %13 = arith.addf %8, %12 : vector<8x256xf32>
    %cst_8 = arith.constant 0.797884583 : f32
    %14 = vector.broadcast %cst_8 : f32 to vector<8x256xf32>
    %15 = arith.mulf %14, %13 : vector<8x256xf32>
    %16 = math.tanh %15 : vector<8x256xf32>
    %cst_9 = arith.constant 1.000000e+00 : f32
    %17 = vector.broadcast %cst_9 : f32 to vector<8x256xf32>
    %18 = arith.addf %17, %16 : vector<8x256xf32>
    %cst_10 = arith.constant 5.000000e-01 : f32
    %19 = vector.broadcast %cst_10 : f32 to vector<8x256xf32>
    %20 = arith.mulf %19, %18 : vector<8x256xf32>
    %21 = arith.mulf %8, %20 : vector<8x256xf32>
    %22 = arith.truncf %21 : vector<8x256xf32> to vector<8x256xbf16>
    %c0_11 = arith.constant 0 : index
    %c0_12 = arith.constant 0 : index
    %23 = vector.load %arg5[%c0_11, %c0_12] : memref<8x256xbf16, #tpu.memory_space<vmem>>, vector<8x256xbf16>
    tpu.vector_store %arg5[%c0_11, %c0_12], %22 {strides = array<i32>} : memref<8x256xbf16, #tpu.memory_space<vmem>>, vector<8x256xbf16>,
    return
  }
  func.func @transform_0(%arg0: i32) -> (i32, i32) {
    %c0_i32 = arith.constant 0 : i32
    %c0_i32_0 = arith.constant 0 : i32
    return %arg0, %c0_i32 : i32, i32
  }
  func.func @transform_1(%arg0: i32) -> (i32, i32) {
    %c0_i32 = arith.constant 0 : i32
    %c0_i32_0 = arith.constant 0 : i32
    return %arg0, %c0_i32 : i32, i32
  }
  func.func @transform_2(%arg0: i32) -> (i32, i32) {
    %c0_i32 = arith.constant 0 : i32
    %c0_i32_0 = arith.constant 0 : i32
    %c0_i32_1 = arith.constant 0 : i32
    return %c0_i32, %c0_i32_0 : i32, i32
  }
  func.func @transform_3(%arg0: i32) -> (i32, i32) {
    %c0_i32 = arith.constant 0 : i32
    %c0_i32_0 = arith.constant 0 : i32
    %c0_i32_1 = arith.constant 0 : i32
    return %c0_i32, %c0_i32_0 : i32, i32
  }
  func.func @transform_4(%arg0: i32) -> (i32, i32) {
    %c0_i32 = arith.constant 0 : i32
    %c0_i32_0 = arith.constant 0 : i32
    return %arg0, %c0_i32 : i32, i32
  }
}

module attributes {stable_mosaic.version = 11 : i64} {
  func.func @_ts_losses_kernel(%arg0: i32, %arg1: memref<8x256xbf16, #tpu.memory_space<vmem>>, %arg2: memref<2xf32, #tpu.memory_space<smem>>) attributes {dimension_semantics = [#tpu.dimension_semantics<arbitrary>], iteration_bounds = array<i64: 1>, scalar_prefetch = 0 : i64, scratch_operands = 0 : i64, tpu.core_type = #tpu.core_type<tc>, window_params = [{pipeline_mode = #tpu.pipeline_mode<synchronous>, transform_indices = @transform_0, window_bounds = array<i64: 8, 256>}, {transform_indices = @transform_1, window_bounds = array<i64: 2>}]} {
    %c0 = arith.constant 0 : index
    %c0_0 = arith.constant 0 : index
    %0 = vector.load %arg1[%c0, %c0_0] : memref<8x256xbf16, #tpu.memory_space<vmem>>, vector<8x256xbf16>
    %1 = arith.extf %0 : vector<8x256xbf16> to vector<8x256xf32>
    %2 = vector.extract_strided_slice %1 {offsets = [0, 0], sizes = [4, 256], strides = [1, 1]} : vector<8x256xf32> to vector<4x256xf32>
    %3 = vector.extract_strided_slice %1 {offsets = [4, 0], sizes = [4, 256], strides = [1, 1]} : vector<8x256xf32> to vector<4x256xf32>
    %4 = vector.extract_strided_slice %2 {offsets = [0, 0], sizes = [4, 128], strides = [1, 1]} : vector<4x256xf32> to vector<4x128xf32>
    %5 = vector.extract_strided_slice %2 {offsets = [0, 128], sizes = [4, 128], strides = [1, 1]} : vector<4x256xf32> to vector<4x128xf32>
    %6 = arith.subf %4, %5 : vector<4x128xf32>
    %7 = vector.extract_strided_slice %2 {offsets = [0, 128], sizes = [4, 128], strides = [1, 1]} : vector<4x256xf32> to vector<4x128xf32>
    %8 = vector.extract_strided_slice %3 {offsets = [0, 128], sizes = [4, 128], strides = [1, 1]} : vector<4x256xf32> to vector<4x128xf32>
    %9 = arith.subf %7, %8 : vector<4x128xf32>
    %10 = arith.mulf %6, %6 : vector<4x128xf32>
    %11 = vector.shape_cast %10 : vector<4x128xf32> to vector<1x4x128xf32>
    %cst = arith.constant dense<0.000000e+00> : vector<1xf32>
    %12 = vector.multi_reduction <add>, %11, %cst [1, 2] : vector<1x4x128xf32> to vector<1xf32>
    %13 = vector.shape_cast %12 : vector<1xf32> to vector<1x1x1xf32>
    %14 = vector.extract %13[0, 0, 0] : f32 from vector<1x1x1xf32>
    %cst_1 = arith.constant 0.001953125 : f32
    %15 = arith.mulf %14, %cst_1 : f32
    %c0_2 = arith.constant 0 : index
    %16 = memref.load %arg2[%c0_2] : memref<2xf32, #tpu.memory_space<smem>>
    memref.store %15, %arg2[%c0_2] : memref<2xf32, #tpu.memory_space<smem>>
    %17 = arith.mulf %9, %9 : vector<4x128xf32>
    %18 = vector.shape_cast %17 : vector<4x128xf32> to vector<1x4x128xf32>
    %cst_3 = arith.constant dense<0.000000e+00> : vector<1xf32>
    %19 = vector.multi_reduction <add>, %18, %cst_3 [1, 2] : vector<1x4x128xf32> to vector<1xf32>
    %20 = vector.shape_cast %19 : vector<1xf32> to vector<1x1x1xf32>
    %21 = vector.extract %20[0, 0, 0] : f32 from vector<1x1x1xf32>
    %cst_4 = arith.constant 0.001953125 : f32
    %22 = arith.mulf %21, %cst_4 : f32
    %c1 = arith.constant 1 : index
    %23 = memref.load %arg2[%c1] : memref<2xf32, #tpu.memory_space<smem>>
    memref.store %22, %arg2[%c1] : memref<2xf32, #tpu.memory_space<smem>>
    return
  }
  func.func @transform_0(%arg0: i32) -> (i32, i32) {
    %c0_i32 = arith.constant 0 : i32
    %c0_i32_0 = arith.constant 0 : i32
    %c0_i32_1 = arith.constant 0 : i32
    return %c0_i32, %c0_i32_0 : i32, i32
  }
  func.func @transform_1(%arg0: i32) -> i32 {
    %c0_i32 = arith.constant 0 : i32
    %c0_i32_0 = arith.constant 0 : i32
    return %c0_i32 : i32
  }
}

</mosaic_0001>

<llo_original>
// kernel: ts_forward.3
$region0: #{ts_forward.3}
  #allocation0 [shape = 'u32[]', space=smem, size = 0x4, offset = 0x4, fixed_abs, tag = 'smem constant byte address 0x4 - core index']
  #allocation1 [shape = 'u32[144,128]{1,0:T(1,128)}', space=vmem, size = 0x12000, scoped, tag = 'internal scratch']
  %s0 = inlined_call_operand.vmem [shape: bf16[8,256], index: 0, kind: input, shape index: {}]
  %s1 = inlined_call_operand.vmem [shape: f32[2], index: 1, kind: output, shape index: {}]
  %s2 = sld [smem:[#allocation0]]
  $region14: #{ts_forward.3} parent=0
    _
  %s4 = ssub.s32 1, %s2
  %s5 = scalar_select 0, %s4, %s2
  $region1: #{ts_forward.3} parent=0
    #allocation2 [shape = 'u8[512]{0}', space=smem, size = 0x200, scoped, tag = 'output window, operand 0, single buffered']
    #allocation3 [shape = 's32[1]{0}', space=sflag, size = 0x4, scoped, tag = 'scoped memory for ts_forward.3']
    %6 = vsyncpa [#allocation3], 0
    // Predicated region
    $region2: #{ts_forward.3} parent=1 // pred_check
      _
    $region3: #{ts_forward.3} parent=1 // pred_check_branch
      %8 = sbr.rel (0) target = $region5
    $region4: #{ts_forward.3} parent=1 // pred_region
      _
    $region5: #{ts_forward.3} parent=1 // pred_fallthru
      _
    %v9 = vld [vmem:[%s0] sm:$0xff]
    %v10 = vunpack.c.l.bf16 %v9
    %v11 = vunpack.c.h.bf16 %v9
    %v12 = vsub.f32 %v10, %v11
    %v14 = vrot.slane %v11, 4
    %v16 = vsub.f32 %v11, %v14
    %v17 = vmul.f32 %v12, %v12
    %vm18 = vcmask 1043456
    %v19 = vsel %vm18, %v17, 0.0
    %20 = vadd.xlane.f32.xlu0 %v19
    %v21 = vpop.xlane.xlu0 %20
    %v22 = vrot.slane %v21, 4
    %v23 = vadd.f32 %v21, %v22
    %v24 = vrot.slane %v23, 2
    %v25 = vadd.f32 %v23, %v24
    %v26 = vrot.slane %v25, 1
    %v27 = vadd.f32 %v25, %v26
    %s28 = vtos %v27
    %s29 = smul.f32 %s28, 0.001953125
    %s30 = scalar_lea.smem [#allocation2], 0
    %31 = sst [smem:[%s30]] %s29
    %v32 = vmul.f32 %v16, %v16
    %v33 = vsel %vm18, %v32, 0.0
    %34 = vadd.xlane.f32.xlu0 %v33
    %v35 = vpop.xlane.xlu0 %34
    %v36 = vrot.slane %v35, 4
    %v37 = vadd.f32 %v35, %v36
    %v38 = vrot.slane %v37, 2
    %v39 = vadd.f32 %v37, %v38
    %v40 = vrot.slane %v39, 1
    %v41 = vadd.f32 %v39, %v40
    %s42 = vtos %v41
    %s43 = smul.f32 %s42, 0.001953125
    %s44 = scalar_lea.smem [#allocation2], 1
    %45 = sst [smem:[%s44]] %s43
    // Predicated region
    $region6: #{ts_forward.3} parent=1 // pred_check
      _
    $region7: #{ts_forward.3} parent=1 // pred_check_branch
      %47 = sbr.rel (0) target = $region9
    $region8: #{ts_forward.3} parent=1 // pred_region
      %s49 = ssub.s32 16, 16
      %50 = vsyncadd [#allocation3], %s49
      %s52 = sshll.u32 %s1, 4
      %s53 = int_to_ptr.vmem [resolvable:$true] %s52
      %55 = dma.smem_to_vmem [#allocation2], 16, %s53, [#allocation3]
    $region9: #{ts_forward.3} parent=1 // pred_fallthru
      _
    // Predicated region
    $region10: #{ts_forward.3} parent=1 // pred_check
      _
    $region11: #{ts_forward.3} parent=1 // pred_check_branch
      %57 = sbr.rel (0) target = $region13
    $region12: #{ts_forward.3} parent=1 // pred_region
      %58 = dma.done [#allocation3], 16
    $region13: #{ts_forward.3} parent=1 // pred_fallthru
      _
    %59 = sfence
    %60 = vsyncpa [#allocation3], 1

// kernel: ts_forward.2
$region0: #{ts_forward.2}
  #allocation0 [shape = 'u32[]', space=smem, size = 0x4, offset = 0x4, fixed_abs, tag = 'smem constant byte address 0x4 - core index']
  #allocation1 [shape = 'u32[144,128]{1,0:T(1,128)}', space=vmem, size = 0x12000, scoped, tag = 'internal scratch']
  %s0 = inlined_call_operand.vmem [shape: bf16[8,128], index: 0, kind: input, shape index: {}]
  %s1 = inlined_call_operand.vmem [shape: bf16[8,1], index: 1, kind: input, shape index: {}]
  %s2 = inlined_call_operand.vmem [shape: bf16[128,256], index: 2, kind: input, shape index: {}]
  %s3 = inlined_call_operand.vmem [shape: f32[1,256], index: 3, kind: input, shape index: {}]
  %s4 = inlined_call_operand.vmem [shape: bf16[8,256], index: 4, kind: output, shape index: {}]
  %s5 = sld [smem:[#allocation0]]
  $region26: #{ts_forward.2} parent=0
    _
  %s7 = ssub.s32 1, %s5
  %s8 = scalar_select 0, %s7, %s5
  // Predicated region
  $region2: #{ts_forward.2} parent=0 // pred_check
    _
  $region3: #{ts_forward.2} parent=0 // pred_check_branch
    %10 = sbr.rel (0) target = $region5
  $region4: #{ts_forward.2} parent=0 // pred_region
    _
  $region5: #{ts_forward.2} parent=0 // pred_fallthru
    _
  // Predicated region
  $region6: #{ts_forward.2} parent=0 // pred_check
    _
  $region7: #{ts_forward.2} parent=0 // pred_check_branch
    %12 = sbr.rel (0) target = $region9
  $region8: #{ts_forward.2} parent=0 // pred_region
    _
  $region9: #{ts_forward.2} parent=0 // pred_fallthru
    _
  // Predicated region
  $region10: #{ts_forward.2} parent=0 // pred_check
    _
  $region11: #{ts_forward.2} parent=0 // pred_check_branch
    %14 = sbr.rel (0) target = $region13
  $region12: #{ts_forward.2} parent=0 // pred_region
    _
  $region13: #{ts_forward.2} parent=0 // pred_fallthru
    _
  // Predicated region
  $region14: #{ts_forward.2} parent=0 // pred_check
    _
  $region15: #{ts_forward.2} parent=0 // pred_check_branch
    %16 = sbr.rel (0) target = $region17
  $region16: #{ts_forward.2} parent=0 // pred_region
    _
  $region17: #{ts_forward.2} parent=0 // pred_fallthru
    _
  %v18 = vld [vmem:[%s0] sm:$0xf]
  %v19 = vld [vmem:[%s1] sm:$0xf]
  %21 = vset.pattern.permute.xlu0 0
  %22 = vperm.xlu0 %21, %v19
  %v23 = vpop.permute.xlu0 %22
  %v26 = vunpack.c.l.s4 839922192
  %v27 = vunpack.c.0.s8 %v26
  %v28 = vlaneseq
  %v29 = vshrl.u32 %v28, 7
  %v30 = vsub.s32 %v27, %v29
  %v31 = vrot.slane %v23, %v30
  %v32 = vmul.bf16 %v18, %v31
  %v33 = vld [vmem:[%s2] sm:$0xff]
  %v34 = vld [vmem:[%s2 + $0x8] sm:$0xff]
  %v35 = vld [vmem:[%s2 + $0x10] sm:$0xff]
  %v36 = vld [vmem:[%s2 + $0x18] sm:$0xff]
  %v37 = vld [vmem:[%s2 + $0x20] sm:$0xff]
  %v38 = vld [vmem:[%s2 + $0x28] sm:$0xff]
  %v39 = vld [vmem:[%s2 + $0x30] sm:$0xff]
  %v40 = vld [vmem:[%s2 + $0x38] sm:$0xff]
  %v41 = vld [vmem:[%s2 + $0x40] sm:$0xff]
  %v42 = vld [vmem:[%s2 + $0x48] sm:$0xff]
  %v43 = vld [vmem:[%s2 + $0x50] sm:$0xff]
  %v44 = vld [vmem:[%s2 + $0x58] sm:$0xff]
  %v45 = vld [vmem:[%s2 + $0x60] sm:$0xff]
  %v46 = vld [vmem:[%s2 + $0x68] sm:$0xff]
  %v47 = vld [vmem:[%s2 + $0x70] sm:$0xff]
  %v48 = vld [vmem:[%s2 + $0x78] sm:$0xff]
  %v49 = vld [vmem:[%s3] sm:$0x3]
  %v51 = vlaneseq
  %v52 = vshrl.u32 %v51, 7
  %v53 = vsub.s32 0, %v52
  %v54 = vrot.slane %v49, %v53
  %v55 = vlaneseq
  %v56 = vshrl.u32 %v55, 7
  %v57 = vsub.s32 1, %v56
  %v58 = vrot.slane %v49, %v57
  %v77 = vunpack.c.l.b16 %v33
  %v78 = vunpack.c.h.b16 %v33
  %v79 = vunpack.c.l.b16 %v34
  %v80 = vunpack.c.h.b16 %v34
  %v81 = vunpack.c.l.b16 %v35
  %v82 = vunpack.c.h.b16 %v35
  %v83 = vunpack.c.l.b16 %v36
  %v84 = vunpack.c.h.b16 %v36
  %v85 = vunpack.c.l.b16 %v37
  %v86 = vunpack.c.h.b16 %v37
  %v87 = vunpack.c.l.b16 %v38
  %v88 = vunpack.c.h.b16 %v38
  %v89 = vunpack.c.l.b16 %v39
  %v90 = vunpack.c.h.b16 %v39
  %v91 = vunpack.c.l.b16 %v40
  %v92 = vunpack.c.h.b16 %v40
  %v93 = vunpack.c.l.b16 %v41
  %v94 = vunpack.c.h.b16 %v41
  %v95 = vunpack.c.l.b16 %v42
  %v96 = vunpack.c.h.b16 %v42
  %v97 = vunpack.c.l.b16 %v43
  %v98 = vunpack.c.h.b16 %v43
  %v99 = vunpack.c.l.b16 %v44
  %v100 = vunpack.c.h.b16 %v44
  %v101 = vunpack.c.l.b16 %v45
  %v102 = vunpack.c.h.b16 %v45
  %v103 = vunpack.c.l.b16 %v46
  %v104 = vunpack.c.h.b16 %v46
  %v105 = vunpack.c.l.b16 %v47
  %v106 = vunpack.c.h.b16 %v47
  %v107 = vunpack.c.l.b16 %v48
  %v108 = vunpack.c.h.b16 %v48
  %v109 = vpack.c.b16 %v79, %v77
  %v110 = vpack.c.b16 %v80, %v78
  %v111 = vpack.c.b16 %v83, %v81
  %v112 = vpack.c.b16 %v84, %v82
  %v113 = vpack.c.b16 %v87, %v85
  %v114 = vpack.c.b16 %v88, %v86
  %v115 = vpack.c.b16 %v91, %v89
  %v116 = vpack.c.b16 %v92, %v90
  %v117 = vpack.c.b16 %v95, %v93
  %v118 = vpack.c.b16 %v96, %v94
  %v119 = vpack.c.b16 %v99, %v97
  %v120 = vpack.c.b16 %v100, %v98
  %v121 = vpack.c.b16 %v103, %v101
  %v122 = vpack.c.b16 %v104, %v102
  %v123 = vpack.c.b16 %v107, %v105
  %v124 = vpack.c.b16 %v108, %v106
  %141 = vmatprep.subr.bf16.mxu0 %v110
  %142 = vmatpush1.bf16.msra.mxu0 %v109
  %143 = vmatprep.subr.bf16.mxu0 %v112
  %144 = vmatpush1.bf16.msra.mxu0 %v111
  %145 = vmatprep.subr.bf16.mxu0 %v114
  %146 = vmatpush1.bf16.msra.mxu0 %v113
  %147 = vmatprep.subr.bf16.mxu0 %v116
  %148 = vmatpush1.bf16.msra.mxu0 %v115
  %149 = vmatprep.subr.bf16.mxu0 %v118
  %150 = vmatpush1.bf16.msra.mxu0 %v117
  %151 = vmatprep.subr.bf16.mxu0 %v120
  %152 = vmatpush1.bf16.msra.mxu0 %v119
  %153 = vmatprep.subr.bf16.mxu0 %v122
  %154 = vmatpush1.bf16.msra.mxu0 %v121
  %155 = vmatprep.subr.bf16.mxu0 %v124
  %156 = vmatpush1.bf16.msra.mxu0 %v123
  %157 = vmatprep.subr.bf16.mxu0 0
  %158 = vmatpush1.bf16.msra.mxu0 0
  %159 = vmatprep.subr.bf16.mxu0 0
  %160 = vmatpush1.bf16.msra.mxu0 0
  %161 = vmatprep.subr.bf16.mxu0 0
  %162 = vmatpush1.bf16.msra.mxu0 0
  %163 = vmatprep.subr.bf16.mxu0 0
  %164 = vmatpush1.bf16.msra.mxu0 0
  %165 = vmatprep.subr.bf16.mxu0 0
  %166 = vmatpush1.bf16.msra.mxu0 0
  %167 = vmatprep.subr.bf16.mxu0 0
  %168 = vmatpush1.bf16.msra.mxu0 0
  %169 = vmatprep.subr.bf16.mxu0 0
  %170 = vmatpush1.bf16.msra.mxu0 0
  %171 = vmatprep.subr.bf16.mxu0 0
  %172 = vmatpush1.bf16.msra.mxu0 0
  %173 = vmatprep.mubr.bf16.mxu0 0
  %174 = vmatmul.mubr.bf16.gmra.mrb[0].mxu0 %v32
  %v175 = vpop.f32.mrb[0].mxu0
  %v176 = vadd.f32 %v54, %v175
  %v177 = vpop.f32.mrb[0].mxu0
  %v178 = vadd.f32 %v58, %v177
  %v179 = vpop.f32.mrb[0].mxu0
  %v180 = vpop.f32.mrb[0].mxu0
  %181 = vdwg.mxu0
  %v182 = vmul.f32 %v176, %v176
  %v183 = vmul.f32 %v178, %v178
  %v184 = vmul.f32 %v176, %v182
  %v185 = vmul.f32 %v178, %v183
  %v186 = vmul.f32 %v184, 0.044715
  %v187 = vmul.f32 %v185, 0.044715
  %v188 = vadd.f32 %v176, %v186
  %v189 = vadd.f32 %v178, %v187
  %v190 = vmul.f32 %v188, 0.7978846
  %v191 = vmul.f32 %v189, 0.7978846
  %v192 = vtanh.pop %v190
  %v193 = vtanh.pop %v191
  %v194 = vadd.f32 %v192, 1.0
  %v195 = vadd.f32 %v193, 1.0
  %v196 = vmul.f32 %v194, 0.5
  %v197 = vmul.f32 %v195, 0.5
  %v198 = vmul.f32 %v176, %v196
  %v199 = vmul.f32 %v178, %v197
  %v200 = vpack.c.bf16 %v198, %v198
  %v201 = vpack.c.bf16 %v199, %v199
  %v204 = vunpack.c.l.b16 %v200
  %v205 = vunpack.c.l.b16 %v201
  %v206 = vpack.c.b16 %v205, %v204
  %208 = vst [vmem:[%s4] sm:$0xff] %v206
  // Predicated region
  $region18: #{ts_forward.2} parent=0 // pred_check
    _
  $region19: #{ts_forward.2} parent=0 // pred_check_branch
    %210 = sbr.rel (0) target = $region21
  $region20: #{ts_forward.2} parent=0 // pred_region
    _
  $region21: #{ts_forward.2} parent=0 // pred_fallthru
    _
  // Predicated region
  $region22: #{ts_forward.2} parent=0 // pred_check
    _
  $region23: #{ts_forward.2} parent=0 // pred_check_branch
    %212 = sbr.rel (0) target = $region25
  $region24: #{ts_forward.2} parent=0 // pred_region
    _
  $region25: #{ts_forward.2} parent=0 // pred_fallthru
    _

</llo_original>
